<compile_context>
chip_gen: v7x
topology: tpu7x:2x2x1
jax: 0.10.0
libtpu: 0.0.40
codegen_flags: <defaults>
</compile_context>

<pallas_src>
import functools
import math

import jax
import jax.numpy as jnp
from jax.experimental import pallas as pl
from jax.experimental.pallas import tpu as pltpu


def _time2vec_kernel(tau_ref, w_ref, b_ref, o_ref, *, out_features, use_mxu):
    # tau_ref: (TILE_R, K)  grouped time values            (K = g * in_features)
    # w_ref:   (K, L)       grouped block-diagonal weights (L = g * out_features)
    # b_ref:   (1, L)       grouped bias (last lane of each F-group is b0)
    # o_ref:   (TILE_R, L)  lane-dense output tile
    tau = tau_ref[...].astype(jnp.float32)
    w = w_ref[...].astype(jnp.float32)
    b = b_ref[...].astype(jnp.float32)

    if use_mxu:
        # Only for ungrouped inputs (g == 1) with a genuinely large contraction.
        y = jnp.dot(tau, w, preferred_element_type=jnp.float32) + b
    else:
        # Tiny contraction (Time2Vec default in_features == 1): broadcast FMAs
        # on the VPU; an MXU dot would see only a K-sliver and pay push/drain.
        k_dim = tau.shape[1]
        y = tau[:, 0:1] * w[0:1, :] + b
        for k in range(1, k_dim):
            y = y + tau[:, k:k + 1] * w[k:k + 1, :]

    # Within each group of `out_features` lanes, the last lane is the linear
    # term (tau @ w0 + b0); all others get sin().
    col = jax.lax.broadcasted_iota(jnp.int32, y.shape, dimension=1)
    is_periodic = (col % out_features) != (out_features - 1)
    o_ref[...] = jnp.where(is_periodic, jnp.sin(y), y).astype(o_ref.dtype)


def _block_byte_budget():
    """Per-grid-step (input+output block) byte budget, generation-aware."""
    try:
        vmem = getattr(pltpu.get_tpu_info(), "vmem_capacity_bytes", None)
    except Exception:
        vmem = None
    if vmem is not None and vmem >= (100 << 20):
        return 4 << 20          # v5e / v6e: 128 MiB VMEM -> roomier blocks
    return 2 << 20              # v7x (64 MiB VMEM / 2 TCs) or unknown


def time2vec(tau, w0, b0, w, b, *, out_dtype=None, block_bytes=None):
    """Forward pass of Time2Vec with activation='sin'.

    tau: (N, in_features)
    w0:  (in_features, 1),  b0: (1,)
    w:   (in_features, out_features-1),  b: (out_features-1,)
    returns (N, out_features) = concat([sin(tau @ w + b), tau @ w0 + b0], axis=1)
    """
    n, in_features = tau.shape
    out_features = w.shape[1] + 1
    out_dtype = tau.dtype if out_dtype is None else jnp.dtype(out_dtype)
    if block_bytes is None:
        block_bytes = _block_byte_budget()

    # ---- fuse periodic + linear parameters ---------------------------------
    w_cat = jnp.concatenate([w, w0], axis=1)                          # (in, F)
    b_cat = jnp.concatenate([b, b0], axis=0).reshape(1, out_features)

    # ---- lane-dense grouping (pad N instead of bailing to g=1) -------------
    g = 128 // math.gcd(out_features, 128)
    g = min(g, 16)               # bound FMA redundancy / grouped weight size
    n_pad = ((n + g - 1) // g) * g
    tau_p = jnp.pad(tau, ((0, n_pad - n), (0, 0))) if n_pad != n else tau

    k_dim = g * in_features      # grouped contraction size
    l_dim = g * out_features     # grouped (lane-dense) output width
    r_dim = n_pad // g           # grouped row count

    if g > 1:
        # Block-diagonal grouped weight: W_big[h*in+i, h'*F+c] = (h==h') w_cat[i,c]
        eye = jnp.eye(g, dtype=w_cat.dtype)
        w_big = jnp.einsum("gh,ic->gihc", eye, w_cat).reshape(k_dim, l_dim)
        b_big = jnp.tile(b_cat, (1, g))
    else:
        w_big, b_big = w_cat, b_cat

    # Free (contiguous) reshape: (N_pad, in) -> (N_pad/g, g*in).
    tau_g = tau_p.reshape(r_dim, k_dim)

    # MXU only when ungrouped and the contraction is genuinely large.
    use_mxu = (g == 1) and (in_features > 8)

    # ---- batch tiling: budget-derived blocks, >=2 steps when big ------------
    bytes_per_row = (l_dim * jnp.dtype(out_dtype).itemsize
                     + k_dim * tau.dtype.itemsize)
    tile_r = max(16, int(block_bytes) // int(bytes_per_row))
    tile_r = (tile_r // 16) * 16         # sublane-aligned for f32 and bf16
    if tile_r >= r_dim:
        if r_dim >= 64:
            # Keep at least 2 grid steps so the "parallel" batch axis gives
            # work to both TensorCores on v7x (harmless on v5e/v6e).
            tile_r = (((r_dim + 1) // 2) + 15) // 16 * 16
        else:
            tile_r = r_dim               # full extent (no alignment needed)
    grid = (pl.cdiv(r_dim, tile_r),)

    cost = pl.CostEstimate(
        flops=2 * n_pad * in_features * out_features + n_pad * out_features,
        transcendentals=n_pad * (out_features - 1),
        bytes_accessed=(tau.dtype.itemsize * n_pad * in_features
                        + jnp.dtype(out_dtype).itemsize * n_pad * out_features
                        + 4 * (k_dim * l_dim + l_dim)),
    )

    out_g = pl.pallas_call(
        functools.partial(_time2vec_kernel,
                          out_features=out_features, use_mxu=use_mxu),
        out_shape=jax.ShapeDtypeStruct((r_dim, l_dim), out_dtype),
        grid_spec=pltpu.PrefetchScalarGridSpec(
            num_scalar_prefetch=0,
            grid=grid,
            in_specs=[
                pl.BlockSpec((tile_r, k_dim), lambda i: (i, 0)),  # tau (pipelined)
                pl.BlockSpec((k_dim, l_dim), lambda i: (0, 0)),   # weights (resident)
                pl.BlockSpec((1, l_dim), lambda i: (0, 0)),       # bias (resident)
            ],
            out_specs=pl.BlockSpec((tile_r, l_dim), lambda i: (i, 0)),
        ),
        compiler_params=pltpu.CompilerParams(
            dimension_semantics=("parallel",),   # shard batch axis across TCs
            vmem_limit_bytes=32 << 20,           # safe on v5e/v6e/v7x
        ),
        cost_estimate=cost,
    )(tau_g, w_big, b_big)

    # Free (contiguous) reshape back to the reference layout; drop pad rows.
    out = out_g.reshape(n_pad, out_features)
    return out[:n] if n_pad != n else out


def time2vec_ref(tau, w0, b0, w, b):
    """Pure-JAX reference matching the PyTorch forward exactly."""
    v1 = jnp.sin(jnp.matmul(tau, w) + b)
    v2 = jnp.matmul(tau, w0) + b0
    return jnp.concatenate([v1, v2], axis=1)


def _check(key, n, in_features, out_features, *, out_dtype=None,
           block_bytes=None, atol=1e-5, rtol=1e-5):
    ks = jax.random.split(key, 5)
    tau = jax.random.normal(ks[0], (n, in_features), dtype=jnp.float32)
    w0 = jax.random.normal(ks[1], (in_features, 1), dtype=jnp.float32)
    b0 = jax.random.normal(ks[2], (1,), dtype=jnp.float32)
    w = jax.random.normal(ks[3], (in_features, out_features - 1), dtype=jnp.float32)
    b = jax.random.normal(ks[4], (out_features - 1,), dtype=jnp.float32)

    fwd = jax.jit(functools.partial(time2vec, out_dtype=out_dtype,
                                    block_bytes=block_bytes))
    out = jax.block_until_ready(fwd(tau, w0, b0, w, b))
    ref = time2vec_ref(tau, w0, b0, w, b)
    assert out.shape == (n, out_features), out.shape
    assert jnp.allclose(out.astype(jnp.float32), ref, atol=atol, rtol=rtol), \
        f"mismatch n={n} in={in_features} F={out_features} dtype={out_dtype}"


if __name__ == "__main__":
    key = jax.random.PRNGKey(0)
    k1, k2, k3, k4, k5 = jax.random.split(key, 5)

    # Small demo (Time2Vec defaults: in_features=1, F=32, g=4 lane grouping).
    _check(k1, 8, 1, 32)

    # Multi-tile pipelined grid + ragged N (padded to a multiple of g).
    _check(k2, 4999, 1, 32, block_bytes=128 * 1024)

    # Grouped config with in_features>1 and F not a multiple of 32 (g=16).
    _check(k3, 1000, 3, 40, atol=1e-4, rtol=1e-4)

    # Ungrouped (F=128) with a large contraction -> MXU dot path, 2 grid steps.
    _check(k4, 256, 16, 128, atol=1e-4, rtol=1e-4)

    # bf16 output store (f32 compute, cast only at the store).
    _check(k5, 8, 1, 32, out_dtype=jnp.bfloat16, atol=5e-2, rtol=2e-2)

    print("KERNEL_OK")
</pallas_src>

<mosaic_0001>
module attributes {stable_mosaic.version = 11 : i64} {
  func.func @_time2vec_kernel(%arg0: i32, %arg1: memref<2x4xf32, #tpu.memory_space<vmem>>, %arg2: memref<4x128xf32, #tpu.memory_space<vmem>>, %arg3: memref<1x128xf32, #tpu.memory_space<vmem>>, %arg4: memref<2x128xf32, #tpu.memory_space<vmem>>) attributes {dimension_semantics = [#tpu.dimension_semantics<parallel>], iteration_bounds = array<i64: 1>, scalar_prefetch = 0 : i64, scratch_operands = 0 : i64, tpu.core_type = #tpu.core_type<tc>, window_params = [{transform_indices = @transform_0, window_bounds = array<i64: 2, 4>}, {pipeline_mode = #tpu.pipeline_mode<synchronous>, transform_indices = @transform_1, window_bounds = array<i64: 4, 128>}, {pipeline_mode = #tpu.pipeline_mode<synchronous>, transform_indices = @transform_2, window_bounds = array<i64: 1, 128>}, {transform_indices = @transform_3, window_bounds = array<i64: 2, 128>}]} {
    %c0 = arith.constant 0 : index
    %c0_0 = arith.constant 0 : index
    %0 = vector.load %arg1[%c0, %c0_0] : memref<2x4xf32, #tpu.memory_space<vmem>>, vector<2x4xf32>
    %c0_1 = arith.constant 0 : index
    %c0_2 = arith.constant 0 : index
    %1 = vector.load %arg2[%c0_1, %c0_2] : memref<4x128xf32, #tpu.memory_space<vmem>>, vector<4x128xf32>
    %c0_3 = arith.constant 0 : index
    %c0_4 = arith.constant 0 : index
    %2 = vector.load %arg3[%c0_3, %c0_4] : memref<1x128xf32, #tpu.memory_space<vmem>>, vector<1x128xf32>
    %3 = vector.extract_strided_slice %0 {offsets = [0, 0], sizes = [2, 1], strides = [1, 1]} : vector<2x4xf32> to vector<2x1xf32>
    %4 = vector.extract_strided_slice %1 {offsets = [0, 0], sizes = [1, 128], strides = [1, 1]} : vector<4x128xf32> to vector<1x128xf32>
    %5 = vector.broadcast %3 : vector<2x1xf32> to vector<2x128xf32>
    %6 = vector.broadcast %4 : vector<1x128xf32> to vector<2x128xf32>
    %7 = arith.mulf %5, %6 : vector<2x128xf32>
    %8 = vector.broadcast %2 : vector<1x128xf32> to vector<2x128xf32>
    %9 = arith.addf %7, %8 : vector<2x128xf32>
    %10 = vector.extract_strided_slice %0 {offsets = [0, 1], sizes = [2, 1], strides = [1, 1]} : vector<2x4xf32> to vector<2x1xf32>
    %11 = vector.extract_strided_slice %1 {offsets = [1, 0], sizes = [1, 128], strides = [1, 1]} : vector<4x128xf32> to vector<1x128xf32>
    %12 = vector.broadcast %10 : vector<2x1xf32> to vector<2x128xf32>
    %13 = vector.broadcast %11 : vector<1x128xf32> to vector<2x128xf32>
    %14 = arith.mulf %12, %13 : vector<2x128xf32>
    %15 = arith.addf %9, %14 : vector<2x128xf32>
    %16 = vector.extract_strided_slice %0 {offsets = [0, 2], sizes = [2, 1], strides = [1, 1]} : vector<2x4xf32> to vector<2x1xf32>
    %17 = vector.extract_strided_slice %1 {offsets = [2, 0], sizes = [1, 128], strides = [1, 1]} : vector<4x128xf32> to vector<1x128xf32>
    %18 = vector.broadcast %16 : vector<2x1xf32> to vector<2x128xf32>
    %19 = vector.broadcast %17 : vector<1x128xf32> to vector<2x128xf32>
    %20 = arith.mulf %18, %19 : vector<2x128xf32>
    %21 = arith.addf %15, %20 : vector<2x128xf32>
    %22 = vector.extract_strided_slice %0 {offsets = [0, 3], sizes = [2, 1], strides = [1, 1]} : vector<2x4xf32> to vector<2x1xf32>
    %23 = vector.extract_strided_slice %1 {offsets = [3, 0], sizes = [1, 128], strides = [1, 1]} : vector<4x128xf32> to vector<1x128xf32>
    %24 = vector.broadcast %22 : vector<2x1xf32> to vector<2x128xf32>
    %25 = vector.broadcast %23 : vector<1x128xf32> to vector<2x128xf32>
    %26 = arith.mulf %24, %25 : vector<2x128xf32>
    %27 = arith.addf %21, %26 : vector<2x128xf32>
    %28 = tpu.iota {dimensions = array<i32: 1>} : vector<2x128xi32>
    %c32_i32 = arith.constant 32 : i32
    %c0_i32 = arith.constant 0 : i32
    %29 = arith.cmpi eq, %c32_i32, %c0_i32 : i32
    %c1_i32 = arith.constant 1 : i32
    %30 = arith.select %29, %c1_i32, %c32_i32 : i32
    %31 = vector.broadcast %30 : i32 to vector<2x128xi32>
    %32 = arith.remsi %28, %31 : vector<2x128xi32>
    %c0_i32_5 = arith.constant 0 : i32
    %33 = vector.broadcast %c0_i32_5 : i32 to vector<2x128xi32>
    %34 = arith.cmpi ne, %32, %33 : vector<2x128xi32>
    %c0_i32_6 = arith.constant 0 : i32
    %35 = vector.broadcast %c0_i32_6 : i32 to vector<2x128xi32>
    %36 = arith.cmpi slt, %32, %35 : vector<2x128xi32>
    %c0_i32_7 = arith.constant 0 : i32
    %37 = arith.cmpi slt, %30, %c0_i32_7 : i32
    %38 = vector.broadcast %37 : i1 to vector<2x128xi1>
    %39 = vector.broadcast %38 : vector<2x128xi1> to vector<2x128xi1>
    %40 = arith.xori %36, %39 : vector<2x128xi1>
    %41 = arith.andi %40, %34 : vector<2x128xi1>
    %42 = vector.broadcast %30 : i32 to vector<2x128xi32>
    %43 = arith.addi %32, %42 : vector<2x128xi32>
    %44 = arith.select %41, %43, %32 : vector<2x128xi1>, vector<2x128xi32>
    %c31_i32 = arith.constant 31 : i32
    %45 = vector.broadcast %c31_i32 : i32 to vector<2x128xi32>
    %46 = arith.cmpi ne, %44, %45 : vector<2x128xi32>
    %47 = math.sin %27 : vector<2x128xf32>
    %48 = arith.select %46, %47, %27 : vector<2x128xi1>, vector<2x128xf32>
    %c0_8 = arith.constant 0 : index
    %c0_9 = arith.constant 0 : index
    %49 = vector.load %arg4[%c0_8, %c0_9] : memref<2x128xf32, #tpu.memory_space<vmem>>, vector<2x128xf32>
    tpu.vector_store %arg4[%c0_8, %c0_9], %48 {strides = array<i32>} : memref<2x128xf32, #tpu.memory_space<vmem>>, vector<2x128xf32>,
    return
  }
  func.func @transform_0(%arg0: i32) -> (i32, i32) {
    %c0_i32 = arith.constant 0 : i32
    %c0_i32_0 = arith.constant 0 : i32
    return %arg0, %c0_i32 : i32, i32
  }
  func.func @transform_1(%arg0: i32) -> (i32, i32) {
    %c0_i32 = arith.constant 0 : i32
    %c0_i32_0 = arith.constant 0 : i32
    %c0_i32_1 = arith.constant 0 : i32
    return %c0_i32, %c0_i32_0 : i32, i32
  }
  func.func @transform_2(%arg0: i32) -> (i32, i32) {
    %c0_i32 = arith.constant 0 : i32
    %c0_i32_0 = arith.constant 0 : i32
    %c0_i32_1 = arith.constant 0 : i32
    return %c0_i32, %c0_i32_0 : i32, i32
  }
  func.func @transform_3(%arg0: i32) -> (i32, i32) {
    %c0_i32 = arith.constant 0 : i32
    %c0_i32_0 = arith.constant 0 : i32
    return %arg0, %c0_i32 : i32, i32
  }
}

</mosaic_0001>

<llo_original>
// kernel: time2vec.1
$region0: #{time2vec.1}
  #allocation0 [shape = 'u32[]', space=smem, size = 0x4, offset = 0x4, fixed_abs, tag = 'smem constant byte address 0x4 - core index']
  #allocation1 [shape = 'u32[144,128]{1,0:T(1,128)}', space=vmem, size = 0x12000, scoped, tag = 'internal scratch']
  %s0 = inlined_call_operand.vmem [shape: f32[2,4], index: 0, kind: input, shape index: {}]
  %s1 = inlined_call_operand.vmem [shape: f32[4,128], index: 1, kind: input, shape index: {}]
  %s2 = inlined_call_operand.vmem [shape: f32[1,128], index: 2, kind: input, shape index: {}]
  %s3 = inlined_call_operand.vmem [shape: f32[2,128], index: 3, kind: output, shape index: {}]
  %s4 = sld [smem:[#allocation0]]
  $region22: #{time2vec.1} parent=0
    _
  %s6 = ssub.s32 1, %s4
  %s7 = scalar_select 0, %s6, %s4
  // Predicated region
  $region2: #{time2vec.1} parent=0 // pred_check
    _
  $region3: #{time2vec.1} parent=0 // pred_check_branch
    %9 = sbr.rel (0) target = $region5
  $region4: #{time2vec.1} parent=0 // pred_region
    _
  $region5: #{time2vec.1} parent=0 // pred_fallthru
    _
  // Predicated region
  $region6: #{time2vec.1} parent=0 // pred_check
    _
  $region7: #{time2vec.1} parent=0 // pred_check_branch
    %11 = sbr.rel (0) target = $region9
  $region8: #{time2vec.1} parent=0 // pred_region
    _
  $region9: #{time2vec.1} parent=0 // pred_fallthru
    _
  // Predicated region
  $region10: #{time2vec.1} parent=0 // pred_check
    _
  $region11: #{time2vec.1} parent=0 // pred_check_branch
    %13 = sbr.rel (0) target = $region13
  $region12: #{time2vec.1} parent=0 // pred_region
    _
  $region13: #{time2vec.1} parent=0 // pred_fallthru
    _
  %v14 = vld [vmem:[%s0] sm:$0x3]
  %v15 = vld [vmem:[%s1] sm:$0xf]
  %v16 = vld [vmem:[%s2] sm:$0x1]
  %18 = vset.pattern.permute.xlu0 0
  %19 = vperm.xlu0 %18, %v14
  %v20 = vpop.permute.xlu0 %19
  %v22 = vlaneseq
  %v23 = vshrl.u32 %v22, 7
  %v24 = vsub.s32 0, %v23
  %v25 = vrot.slane %v15, %v24
  %v26 = vmul.f32 %v20, %v25
  %v28 = vlaneseq
  %v29 = vshrl.u32 %v28, 7
  %v30 = vsub.s32 0, %v29
  %v31 = vrot.slane %v16, %v30
  %v33 = vadd.f32 %v26, %v31
  %34 = vset.pattern.permute.xlu0 1
  %35 = vperm.xlu0 %34, %v14
  %v36 = vpop.permute.xlu0 %35
  %v38 = vlaneseq
  %v39 = vshrl.u32 %v38, 7
  %v40 = vsub.s32 1, %v39
  %v41 = vrot.slane %v15, %v40
  %v42 = vmul.f32 %v36, %v41
  %v43 = vadd.f32 %v33, %v42
  %44 = vset.pattern.permute.xlu0 2
  %45 = vperm.xlu0 %44, %v14
  %v46 = vpop.permute.xlu0 %45
  %v48 = vlaneseq
  %v49 = vshrl.u32 %v48, 7
  %v50 = vsub.s32 2, %v49
  %v51 = vrot.slane %v15, %v50
  %v52 = vmul.f32 %v46, %v51
  %v53 = vadd.f32 %v43, %v52
  %54 = vset.pattern.permute.xlu0 3
  %55 = vperm.xlu0 %54, %v14
  %v56 = vpop.permute.xlu0 %55
  %v58 = vlaneseq
  %v59 = vshrl.u32 %v58, 7
  %v60 = vsub.s32 3, %v59
  %v61 = vrot.slane %v15, %v60
  %v62 = vmul.f32 %v56, %v61
  %v63 = vadd.f32 %v53, %v62
  %v64 = vlaneseq
  %v65 = vand.u32 %v64, 127
  %vm66 = vcmp.lt.s32.totalorder %v65, 0
  %v67 = vsub.s32 0, %v65
  %v68 = vsel %vm66, %v67, %v65
  %v69 = vshrl.u32 %v68, 5
  %v70 = vand.u32 %v68, 31
  %v71 = vsub.s32 0, %v70
  %v72 = vsel %vm66, %v71, %v70
  %vm73 = vcmp.ne.s32.totalorder %v72, 0
  %vm74 = vcmp.lt.s32.totalorder %v72, 0
  %vm75 = vmand %vm74, %vm73
  %v76 = vadd.s32 %v72, 32
  %v77 = vsel %vm75, %v76, %v72
  %vm78 = vcmp.ne.s32.totalorder %v77, 31
  %v79 = vand.u32 2147483647, %v63
  %vm80 = vcmp.le.f32.partialorder %v79, 0.7853982
  %vm81 = vcmp.lt.s32.totalorder %v63, 0
  %v82 = vand.u32 %v63, 2139095040
  %v83 = vshrl.u32 %v82, 23
  %v84 = vsub.s32 %v83, 127
  %v85 = vand.u32 2147483647, %v63
  %v86 = vand.u32 %v85, 8388607
  %v87 = vor.u32 %v86, 8388608
  %v88 = vsub.s32 0, %v87
  %v89 = vadd.s32 %v84, 1
  %vm90 = vcmp.gt.s32.totalorder %v89, 0
  %v91 = vsel %vm90, %v89, 0
  %v92 = vshrl.u32 %v91, 5
  %v93 = vand.u32 %v91, 31
  %v94 = vsub.s32 32, %v93
  %v95 = vshrl.u32 683565275, %v94
  %v96 = vshll.u32 683565275, %v93
  %v97 = vshrl.u32 2475754826, %v94
  %v98 = vor.u32 %v96, %v97
  %v99 = vshll.u32 2475754826, %v93
  %v100 = vshrl.u32 2131351028, %v94
  %v101 = vor.u32 %v99, %v100
  %v102 = vshll.u32 2131351028, %v93
  %v103 = vshrl.u32 2102212464, %v94
  %v104 = vor.u32 %v102, %v103
  %v105 = vshll.u32 2102212464, %v93
  %v106 = vshrl.u32 920167782, %v94
  %v107 = vor.u32 %v105, %v106
  %v108 = vshll.u32 920167782, %v93
  %v109 = vshrl.u32 1326507024, %v94
  %v110 = vor.u32 %v108, %v109
  %vm111 = vcmp.lt.s32.totalorder %v92, 1
  %vm112 = vcmp.lt.s32.totalorder %v92, 2
  %vm113 = vcmp.lt.s32.totalorder %v92, 3
  %vm114 = vcmp.lt.s32.totalorder %v92, 4
  %v115 = vsel %vm111, %v95, %v98
  %v116 = vsel %vm114, %v104, 2102212464
  %v117 = vsel %vm113, %v101, %v116
  %v118 = vsel %vm112, %v115, %v117
  %v119 = vsel %vm111, %v98, %v101
  %v120 = vsel %vm114, %v107, 920167782
  %v121 = vsel %vm113, %v104, %v120
  %v122 = vsel %vm112, %v119, %v121
  %v123 = vsel %vm111, %v101, %v104
  %v124 = vsel %vm114, %v110, 1326507024
  %v125 = vsel %vm113, %v107, %v124
  %v126 = vsel %vm112, %v123, %v125
  %v127 = vshll.u32 %v87, 8
  %v128 = vmul.u32.u64.compose %v127, %v126
  %v129 = vextract.low.u32 %v128
  %v130 = vextract.high.u32 %v128
  %v131 = vmul.u32.u64.compose %v127, %v122
  %v132 = vextract.low.u32 %v131
  %v133 = vextract.high.u32 %v131
  %v134 = vmul.u32 %v127, %v118
  %v135 = vadd.s32 %v130, %v132
  %vm136 = vc.u32 %v130, %v132
  %v137 = vadd.s32 %v133, 1
  %v138 = vsel %vm136, %v137, %v133
  %v139 = vadd.s32 %v134, %v138
  %v140 = vadd.s32 %v139, 536870912
  %v141 = vshrl.u32 %v140, 30
  %v142 = vshll.u32 %v141, 30
  %v143 = vsub.s32 %v139, %v142
  %vm144 = vcmp.lt.s32.totalorder %v143, 0
  %v145 = vsub.s32 0, %v143
  %v146 = vsel %vm144, %v145, %v143
  %v147 = vclz %v146
  %v148 = vsub.s32 %v147, 2
  %vm149 = vcmp.gt.s32.totalorder 0, %v148
  %v150 = vsel %vm149, 0, %v148
  %v151 = vsub.s32 32, %v150
  %v152 = vshll.u32 %v143, %v150
  %v153 = vshrl.u32 %v135, %v151
  %v154 = vor.u32 %v152, %v153
  %v155 = vsub.s32 4294967266, %v150
  %v156 = vadd.s32 %v155, 127
  %v157 = vshll.u32 %v156, 23
  %v158 = vor.u32 4788187, %v157
  %v159 = vand.u32 2147483647, %v158
  %v161 = vcvt.s32.f32 %v154
  %v162 = vmul.f32 %v161, %v159
  %v163 = vxor.u32 %v162, 2147483648
  %v164 = vsel %vm81, %v163, %v162
  %v165 = vsub.s32 4, %v141
  %v166 = vsel %vm81, %v165, %v141
  %v167 = vsel %vm80, %v63, %v164
  %v168 = vsel %vm80, 0, %v166
  %v169 = vcosq.f32.pop %v167
  %v170 = vsinq.f32.pop %v167
  %vm171 = vweird.f32 %v63
  %v172 = vadd.s32 %v168, 3
  %v173 = vand.u32 %v172, 3
  %vm174 = vcmp.lt.s32.totalorder %v173, 2
  %vm175 = vcmp.eq.s32.totalorder %v173, 0
  %v176 = vxor.u32 %v170, 2147483648
  %v177 = vsel %vm175, %v169, %v176
  %vm178 = vcmp.eq.s32.totalorder %v173, 2
  %v179 = vxor.u32 %v169, 2147483648
  %v180 = vsel %vm178, %v179, %v170
  %v181 = vsel %vm174, %v177, %v180
  %v182 = vsel %vm171, nan, %v181
  %v183 = vsel %vm78, %v182, %v63
  %184 = vst [vmem:[%s3] sm:$0x3] %v183
  // Predicated region
  $region14: #{time2vec.1} parent=0 // pred_check
    _
  $region15: #{time2vec.1} parent=0 // pred_check_branch
    %186 = sbr.rel (0) target = $region17
  $region16: #{time2vec.1} parent=0 // pred_region
    _
  $region17: #{time2vec.1} parent=0 // pred_fallthru
    _
  // Predicated region
  $region18: #{time2vec.1} parent=0 // pred_check
    _
  $region19: #{time2vec.1} parent=0 // pred_check_branch
    %188 = sbr.rel (0) target = $region21
  $region20: #{time2vec.1} parent=0 // pred_region
    _
  $region21: #{time2vec.1} parent=0 // pred_fallthru
    _

</llo_original>
